<compile_context>
chip_gen: v6e
topology: v6e:2x2x1
jax: 0.10.0
libtpu: 0.0.40
codegen_flags: <defaults>
</compile_context>

<pallas_src>
import math

import jax
import jax.numpy as jnp
from jax.experimental import pallas as pl
from jax.experimental.pallas import tpu as pltpu


def _round_up(x, m):
    return -(-x // m) * m


def _tpu_hw():
    """Return (physical VMEM bytes per core, TensorCores per chip), with safe fallbacks."""
    vmem_phys = 128 * 1024 * 1024
    try:
        info = pltpu.get_tpu_info()
        vmem_phys = int(getattr(info, "vmem_capacity_bytes", vmem_phys))
    except Exception:
        pass
    # v7x: 64 MiB VMEM per TensorCore and 2 TensorCores per chip.
    num_tc = 2 if vmem_phys <= 64 * 1024 * 1024 else 1
    return vmem_phys, num_tc


def _choose_tm(m_rows, k, d_pad, vmem_phys, num_tc):
    """Rows per grid step.

    The double-buffered (in-tile + out-tile) plus resident weight/bias must fit
    a generation-aware VMEM budget (input tile occupies round_up(K,128) lanes).
    On multi-TC chips the step count is rounded to a multiple of the core count
    so the 'parallel' axis is balanced; single-TC chips keep the minimum steps.
    """
    m_rows = max(int(m_rows), 1)
    m8 = _round_up(m_rows, 8)
    k_pad = _round_up(k, 128)                       # lane padding of the input tile
    budget = min(28 * 1024 * 1024, int(vmem_phys * 0.40))
    fixed = 2 * 4 * (k_pad * d_pad + d_pad)         # double-buffered weight + bias (f32)
    per_row = 2 * 4 * (k_pad + d_pad)               # double-buffered in + out rows (f32)
    tm = max(8, ((budget - fixed) // per_row) // 8 * 8)
    tm = min(tm, m8)
    steps = pl.cdiv(m_rows, tm)
    if num_tc > 1:
        steps = max(num_tc, _round_up(steps, num_tc))
        tm = min(_round_up(pl.cdiv(m_rows, steps), 8), m8)
    if tm >= m_rows:
        tm = m_rows                                 # single full-extent block
    return tm


def _matmul_bias_kernel(x_ref, w_ref, b_ref, o_ref):
    """x_ref: (TM, 3C) im2col rows; w_ref: (3C, Dp); b_ref: (1, Dp); o_ref: (TM, Dp)."""
    acc = jnp.dot(x_ref[...], w_ref[...], preferred_element_type=jnp.float32)
    o_ref[...] = (acc + b_ref[...]).astype(o_ref.dtype)


def token_embedding(x_ncw, weight, bias):
    """x_ncw: (B, c_in, L) float32; weight: (d_model, c_in, 3); bias: (d_model,).

    Returns (B, L, d_model), matching TokenEmbedding.forward exactly.
    """
    B, C, L = x_ncw.shape
    D = weight.shape[0]
    K = 3 * C
    M = B * L
    D_pad = _round_up(D, 128)

    vmem_phys, num_tc = _tpu_hw()
    TM = _choose_tm(M, K, D_pad, vmem_phys, num_tc)
    # 40 MiB scoped limit on v7x (64 MiB physical), 48 MiB on 128 MiB chips.
    vmem_limit = min(48 * 1024 * 1024, (vmem_phys * 5) // 8)

    # --- im2col rows (plain-JAX glue; fusible into the kernel's input stream) ---
    x_lc = jnp.transpose(x_ncw, (0, 2, 1)).astype(jnp.float32)        # (B, L, C)
    x_halo = jnp.pad(x_lc, ((0, 0), (1, 1), (0, 0)))                  # (B, L+2, C)
    x_rows = jnp.concatenate(
        [x_halo[:, 0:L], x_halo[:, 1:L + 1], x_halo[:, 2:L + 2]], axis=-1
    ).reshape(M, K)                                                    # (B*L, 3C)

    # --- fused weight (3C, D_pad): row index = tap*C + channel, matching im2col ---
    w_fused = jnp.transpose(weight, (2, 1, 0)).reshape(K, D).astype(jnp.float32)
    b_row = bias.reshape(1, D).astype(jnp.float32)
    if D_pad > D:
        w_fused = jnp.pad(w_fused, ((0, 0), (0, D_pad - D)))
        b_row = jnp.pad(b_row, ((0, 0), (0, D_pad - D)))

    cost = pl.CostEstimate(
        flops=2 * M * K * D_pad,
        transcendentals=0,
        bytes_accessed=4 * (M * K + K * D_pad + D_pad + M * D_pad),
    )

    out = pl.pallas_call(
        _matmul_bias_kernel,
        out_shape=jax.ShapeDtypeStruct((M, D_pad), jnp.float32),
        grid_spec=pltpu.PrefetchScalarGridSpec(
            num_scalar_prefetch=0,
            grid=(pl.cdiv(M, TM),),
            in_specs=[
                pl.BlockSpec((TM, K), lambda i: (i, 0)),
                pl.BlockSpec((K, D_pad), lambda i: (0, 0)),
                pl.BlockSpec((1, D_pad), lambda i: (0, 0)),
            ],
            out_specs=pl.BlockSpec((TM, D_pad), lambda i: (i, 0)),
        ),
        compiler_params=pltpu.CompilerParams(
            dimension_semantics=("parallel",),
            vmem_limit_bytes=int(vmem_limit),
            allow_input_fusion=[True, False, False],
        ),
        cost_estimate=cost,
    )(x_rows, w_fused, b_row)

    if D_pad > D:
        out = out[:, :D]
    return out.reshape(B, L, D)


def init_params(key, c_in, d_model):
    """Deterministic params matching the module's __init__ shapes/init style."""
    kw, kb = jax.random.split(key)
    fan_in = c_in * 3  # kernel_size = 3
    # kaiming_normal_(mode='fan_in', nonlinearity='leaky_relu') default slope 0.01
    gain = math.sqrt(2.0 / (1.0 + 0.01 ** 2))
    std = gain / math.sqrt(fan_in)
    weight = std * jax.random.normal(kw, (d_model, c_in, 3), dtype=jnp.float32)
    # nn.Conv1d default bias init: U(-1/sqrt(fan_in), 1/sqrt(fan_in))
    bound = 1.0 / math.sqrt(fan_in)
    bias = jax.random.uniform(kb, (d_model,), minval=-bound, maxval=bound,
                              dtype=jnp.float32)
    return weight, bias


def reference_forward(x_ncw, weight, bias):
    """Pure-JAX reference of Conv1d(k=3, pad=1) + transpose(1, 2)."""
    y = jax.lax.conv_general_dilated(
        x_ncw, weight, window_strides=(1,), padding=((1, 1),),
        dimension_numbers=("NCH", "OIH", "NCH"))
    y = y + bias[None, :, None]
    return jnp.transpose(y, (0, 2, 1))


if __name__ == "__main__":
    key = jax.random.PRNGKey(0)
    kx, kp = jax.random.split(key)

    B, c_in, L, d_model = 2, 4, 16, 32
    x = jax.random.normal(kx, (B, c_in, L), dtype=jnp.float32)  # (B, c_in, L) NCW
    weight, bias = init_params(kp, c_in, d_model)

    out = token_embedding(x, weight, bias)
    out = jax.block_until_ready(out)

    ref = reference_forward(x, weight, bias)
    assert out.shape == (B, L, d_model), out.shape
    assert jnp.allclose(out, ref, atol=1e-5, rtol=1e-5), "mismatch vs reference"

    print("KERNEL_OK")
</pallas_src>

<mosaic_0001>
module attributes {stable_mosaic.version = 11 : i64} {
  func.func @_matmul_bias_kernel(%arg0: i32, %arg1: memref<32x12xf32, #tpu.memory_space<vmem>>, %arg2: memref<12x128xf32, #tpu.memory_space<vmem>>, %arg3: memref<1x128xf32, #tpu.memory_space<vmem>>, %arg4: memref<32x128xf32, #tpu.memory_space<vmem>>) attributes {dimension_semantics = [#tpu.dimension_semantics<parallel>], iteration_bounds = array<i64: 1>, scalar_prefetch = 0 : i64, scratch_operands = 0 : i64, tpu.core_type = #tpu.core_type<tc>, window_params = [{transform_indices = @transform_0, window_bounds = array<i64: 32, 12>}, {pipeline_mode = #tpu.pipeline_mode<synchronous>, transform_indices = @transform_1, window_bounds = array<i64: 12, 128>}, {pipeline_mode = #tpu.pipeline_mode<synchronous>, transform_indices = @transform_2, window_bounds = array<i64: 1, 128>}, {transform_indices = @transform_3, window_bounds = array<i64: 32, 128>}]} {
    %c0 = arith.constant 0 : index
    %c0_0 = arith.constant 0 : index
    %0 = vector.load %arg1[%c0, %c0_0] : memref<32x12xf32, #tpu.memory_space<vmem>>, vector<32x12xf32>
    %c0_1 = arith.constant 0 : index
    %c0_2 = arith.constant 0 : index
    %1 = vector.load %arg2[%c0_1, %c0_2] : memref<12x128xf32, #tpu.memory_space<vmem>>, vector<12x128xf32>
    %cst = arith.constant dense<0.000000e+00> : vector<32x128xf32>
    %2 = tpu.matmul %0, %1, %cst {dimension_numbers = #tpu.dot_dimension_numbers<[1], [0], [0], [1], [0, 0, 1, 1], [], []>} : vector<32x12xf32>, vector<12x128xf32>, vector<32x128xf32> -> vector<32x128xf32>
    %c0_3 = arith.constant 0 : index
    %c0_4 = arith.constant 0 : index
    %3 = vector.load %arg3[%c0_3, %c0_4] : memref<1x128xf32, #tpu.memory_space<vmem>>, vector<1x128xf32>
    %4 = vector.broadcast %3 : vector<1x128xf32> to vector<32x128xf32>
    %5 = arith.addf %2, %4 : vector<32x128xf32>
    %c0_5 = arith.constant 0 : index
    %c0_6 = arith.constant 0 : index
    %6 = vector.load %arg4[%c0_5, %c0_6] : memref<32x128xf32, #tpu.memory_space<vmem>>, vector<32x128xf32>
    tpu.vector_store %arg4[%c0_5, %c0_6], %5 {strides = array<i32>} : memref<32x128xf32, #tpu.memory_space<vmem>>, vector<32x128xf32>,
    return
  }
  func.func @transform_0(%arg0: i32) -> (i32, i32) {
    %c0_i32 = arith.constant 0 : i32
    %c0_i32_0 = arith.constant 0 : i32
    return %arg0, %c0_i32 : i32, i32
  }
  func.func @transform_1(%arg0: i32) -> (i32, i32) {
    %c0_i32 = arith.constant 0 : i32
    %c0_i32_0 = arith.constant 0 : i32
    %c0_i32_1 = arith.constant 0 : i32
    return %c0_i32, %c0_i32_0 : i32, i32
  }
  func.func @transform_2(%arg0: i32) -> (i32, i32) {
    %c0_i32 = arith.constant 0 : i32
    %c0_i32_0 = arith.constant 0 : i32
    %c0_i32_1 = arith.constant 0 : i32
    return %c0_i32, %c0_i32_0 : i32, i32
  }
  func.func @transform_3(%arg0: i32) -> (i32, i32) {
    %c0_i32 = arith.constant 0 : i32
    %c0_i32_0 = arith.constant 0 : i32
    return %arg0, %c0_i32 : i32, i32
  }
}

</mosaic_0001>

<llo_original>
// kernel: tpu_custom_call.1
$region0: #{tpu_custom_call.1}
  #allocation0 [shape = 'u32[]', space=smem, size = 0x4, offset = 0x4, fixed_abs, tag = 'smem constant byte address 0x4 - core index']
  #allocation1 [shape = 'u32[144,128]{1,0:T(1,128)}', space=vmem, size = 0x12000, scoped, tag = 'internal scratch']
  %s0 = inlined_call_operand.vmem [shape: f32[32,12], index: 0, kind: input, shape index: {}]
  %s1 = inlined_call_operand.vmem [shape: f32[12,128], index: 1, kind: input, shape index: {}]
  %s2 = inlined_call_operand.vmem [shape: f32[1,128], index: 2, kind: input, shape index: {}]
  %s3 = inlined_call_operand.hbm [shape: f32[32,128], index: 3, kind: output, shape index: {}]
  %s4 = sld [smem:[#allocation0]]
  $region22: #{tpu_custom_call.1} parent=0
    _
  %s6 = ssub.s32 1, %s4
  %s7 = scalar_select 0, %s6, %s4
  $region1: #{tpu_custom_call.1} parent=0
    #allocation2 [shape = 'u8[16384]{0}', space=vmem, size = 0x4000, scoped, tag = 'output window, operand 0, single buffered']
    #allocation3 [shape = 's32[1]{0}', space=sflag, size = 0x4, scoped, tag = 'scoped memory for tpu_custom_call.1']
    %8 = vsyncpa [#allocation3], 0
    // Predicated region
    $region2: #{tpu_custom_call.1} parent=1 // pred_check
      _
    $region3: #{tpu_custom_call.1} parent=1 // pred_check_branch
      %10 = sbr.rel (0) target = $region5
    $region4: #{tpu_custom_call.1} parent=1 // pred_region
      _
    $region5: #{tpu_custom_call.1} parent=1 // pred_fallthru
      _
    // Predicated region
    $region6: #{tpu_custom_call.1} parent=1 // pred_check
      _
    $region7: #{tpu_custom_call.1} parent=1 // pred_check_branch
      %12 = sbr.rel (0) target = $region9
    $region8: #{tpu_custom_call.1} parent=1 // pred_region
      _
    $region9: #{tpu_custom_call.1} parent=1 // pred_fallthru
      _
    // Predicated region
    $region10: #{tpu_custom_call.1} parent=1 // pred_check
      _
    $region11: #{tpu_custom_call.1} parent=1 // pred_check_branch
      %14 = sbr.rel (0) target = $region13
    $region12: #{tpu_custom_call.1} parent=1 // pred_region
      _
    $region13: #{tpu_custom_call.1} parent=1 // pred_fallthru
      _
    %v15 = vld [vmem:[%s0] sm:$0xff]
    %v16 = vld [vmem:[%s0 + $0x8] sm:$0xff]
    %v17 = vld [vmem:[%s0 + $0x10] sm:$0xff]
    %v18 = vld [vmem:[%s0 + $0x18] sm:$0xff]
    %v19 = vld [vmem:[%s1] sm:$0xff]
    %v20 = vld [vmem:[%s1 + $0x8] sm:$0xf]
    %v21 = vld [vmem:[%s2] sm:$0x1]
    %v23 = vlaneseq
    %v24 = vshrl.u32 %v23, 7
    %v25 = vsub.s32 0, %v24
    %v26 = vrot.slane %v21, %v25
    %vm28 = vcmask 97280
    %v30 = vsel %vm28, %v15, 0
    %v33 = vsel %vm28, %v16, 0
    %v36 = vsel %vm28, %v17, 0
    %v39 = vsel %vm28, %v18, 0
    %vm41 = vcmask 1043456
    %v43 = vsel %vm41, %v20, 0
    %45 = vmatprep.subr.mxu0 0.0
    %46 = vmatpush1.msra.mxu0 0.0
    %47 = vmatprep.subr.mxu0 0.0
    %48 = vmatpush1.msra.mxu0 0.0
    %49 = vmatprep.subr.mxu0 0.0
    %50 = vmatpush1.msra.mxu0 0.0
    %51 = vmatprep.subr.mxu0 0.0
    %52 = vmatpush1.msra.mxu0 0.0
    %53 = vmatprep.subr.mxu0 0.0
    %54 = vmatpush1.msra.mxu0 0.0
    %55 = vmatprep.subr.mxu0 0.0
    %56 = vmatpush1.msra.mxu0 0.0
    %57 = vmatprep.subr.mxu0 0.0
    %58 = vmatpush1.msra.mxu0 0.0
    %59 = vmatprep.subr.mxu0 0.0
    %60 = vmatpush1.msra.mxu0 0.0
    %61 = vmatprep.subr.mxu0 0.0
    %62 = vmatpush1.msra.mxu0 0.0
    %63 = vmatprep.subr.mxu0 0.0
    %64 = vmatpush1.msra.mxu0 0.0
    %65 = vmatprep.subr.mxu0 0.0
    %66 = vmatpush1.msra.mxu0 0.0
    %67 = vmatprep.subr.mxu0 0.0
    %68 = vmatpush1.msra.mxu0 0.0
    %69 = vmatprep.subr.mxu0 0.0
    %70 = vmatpush1.msra.mxu0 0.0
    %71 = vmatprep.subr.mxu0 0.0
    %72 = vmatpush1.msra.mxu0 0.0
    %73 = vmatprep.subr.mxu0 0.0
    %74 = vmatpush1.msra.mxu0 %v43
    %75 = vmatprep.subr.mxu0 0.0
    %76 = vmatpush1.msra.mxu0 %v19
    %77 = vmatprep.subr.mxu0 0.0
    %78 = vmatpush2.msra.mxu0 0.0
    %79 = vmatprep.subr.mxu0 0.0
    %80 = vmatpush2.msra.mxu0 0.0
    %81 = vmatprep.subr.mxu0 0.0
    %82 = vmatpush2.msra.mxu0 0.0
    %83 = vmatprep.subr.mxu0 0.0
    %84 = vmatpush2.msra.mxu0 0.0
    %85 = vmatprep.subr.mxu0 0.0
    %86 = vmatpush2.msra.mxu0 0.0
    %87 = vmatprep.subr.mxu0 0.0
    %88 = vmatpush2.msra.mxu0 0.0
    %89 = vmatprep.subr.mxu0 0.0
    %90 = vmatpush2.msra.mxu0 0.0
    %91 = vmatprep.subr.mxu0 0.0
    %92 = vmatpush2.msra.mxu0 0.0
    %93 = vmatprep.subr.mxu0 0.0
    %94 = vmatpush2.msra.mxu0 0.0
    %95 = vmatprep.subr.mxu0 0.0
    %96 = vmatpush2.msra.mxu0 0.0
    %97 = vmatprep.subr.mxu0 0.0
    %98 = vmatpush2.msra.mxu0 0.0
    %99 = vmatprep.subr.mxu0 0.0
    %100 = vmatpush2.msra.mxu0 0.0
    %101 = vmatprep.subr.mxu0 0.0
    %102 = vmatpush2.msra.mxu0 0.0
    %103 = vmatprep.subr.mxu0 0.0
    %104 = vmatpush2.msra.mxu0 0.0
    %105 = vmatprep.subr.mxu0 0.0
    %106 = vmatpush2.msra.mxu0 0.0
    %107 = vmatprep.subr.mxu0 0.0
    %108 = vmatpush2.msra.mxu0 0.0
    %109 = vmatprep.mubr.f32.mxu0 0.0
    %110 = vmatmul.mubr.f32.gmra.mxu0 %v30
    %v111 = vpop.f32.mrf.mxu0
    %v112 = vadd.f32 %v26, %v111
    %v113 = vpop.f32.mrf.mxu0
    %114 = vmatprep.mubr.f32.mxu0 0.0
    %115 = vmatmul.mubr.f32.gmra.mxu0 %v33
    %v116 = vpop.f32.mrf.mxu0
    %v117 = vadd.f32 %v26, %v116
    %v118 = vpop.f32.mrf.mxu0
    %119 = vmatprep.mubr.f32.mxu0 0.0
    %120 = vmatmul.mubr.f32.gmra.mxu0 %v36
    %v121 = vpop.f32.mrf.mxu0
    %v122 = vadd.f32 %v26, %v121
    %v123 = vpop.f32.mrf.mxu0
    %124 = vmatprep.mubr.f32.mxu0 0.0
    %125 = vmatmul.mubr.f32.gmra.mxu0 %v39
    %v126 = vpop.f32.mrf.mxu0
    %v127 = vadd.f32 %v26, %v126
    %v128 = vpop.f32.mrf.mxu0
    %129 = vdwg.mxu0
    %130 = vst [vmem:[#allocation2] sm:$0xff] %v112
    %131 = vst [vmem:[#allocation2 + $0x8] sm:$0xff] %v117
    %132 = vst [vmem:[#allocation2 + $0x10] sm:$0xff] %v122
    %133 = vst [vmem:[#allocation2 + $0x18] sm:$0xff] %v127
    // Predicated region
    $region14: #{tpu_custom_call.1} parent=1 // pred_check
      _
    $region15: #{tpu_custom_call.1} parent=1 // pred_check_branch
      %135 = sbr.rel (0) target = $region17
    $region16: #{tpu_custom_call.1} parent=1 // pred_region
      %s137 = ssub.s32 512, 512
      %138 = vsyncadd [#allocation3], %s137
      %s139 = sshll.u32 [#allocation2], 4
      %s140 = int_to_ptr.vmem [resolvable:$true] %s139
      %145 = dma.vmem_to_hbm [thread:$0]  %s140, 512, %s3, [#allocation3], 128, 128, 8
    $region17: #{tpu_custom_call.1} parent=1 // pred_fallthru
      _
    // Predicated region
    $region18: #{tpu_custom_call.1} parent=1 // pred_check
      _
    $region19: #{tpu_custom_call.1} parent=1 // pred_check_branch
      %147 = sbr.rel (0) target = $region21
    $region20: #{tpu_custom_call.1} parent=1 // pred_region
      %148 = dma.done [#allocation3], 512
    $region21: #{tpu_custom_call.1} parent=1 // pred_fallthru
      _
    %149 = vsyncpa [#allocation3], 1

</llo_original>
